<compile_context>
chip_gen: v5e
topology: v5e:2x2
jax: 0.10.0
libtpu: 0.0.40
codegen_flags: <defaults>
</compile_context>

<pallas_src>
import functools
import math

import jax
import jax.numpy as jnp
from jax.experimental import pallas as pl
from jax.experimental.pallas import tpu as pltpu


def _ceil_to(v, m):
    return (v + m - 1) // m * m


def _tpu_defaults():
    """Generation-aware (tile_b, vmem_limit_bytes, deep_input_buffering)."""
    try:
        kind = jax.devices()[0].device_kind.lower()
    except Exception:
        kind = ""
    if "v5 lite" in kind or "v5e" in kind or "v5lite" in kind:
        return 128, 32 * 1024 * 1024, True     # 128x128 MXU, lowest HBM BW
    if "v6" in kind:
        return 512, 64 * 1024 * 1024, False    # 256-wide MXU, 128 MiB VMEM
    if "v7" in kind:
        return 256, 32 * 1024 * 1024, False    # 64 MiB VMEM/TC, 2 TCs
    return 256, 32 * 1024 * 1024, False


def alpha_office_kernel(x_ref, w1_ref, b1_ref, w2_ref, b2_ref, y_ref, r_ref,
                        out_ref, *, approx_recip=True):
    # Extractor: Linear(num_ftrs -> hidden) + ReLU.  x streams as f32 and is
    # cast to bf16 in-register (saves a full HBM pad/cast pass in the wrapper).
    x = x_ref[...].astype(jnp.bfloat16)
    h = jnp.dot(x, w1_ref[...], preferred_element_type=jnp.float32)
    h = jnp.maximum(h + b1_ref[...], 0.0)

    # Fold the per-row r_st scale into h: (h*r) @ W2 == (h @ W2) * r exactly.
    # TODO(synk): r could be SMEM-prefetched instead of a (TB,1) VMEM block.
    h = h * r_ref[...].astype(jnp.float32)

    # ClassifierLayerAVH: logits, then the (logits + r*Y)/(r*Y + 1) blend + bias.
    logits = jnp.dot(h.astype(jnp.bfloat16), w2_ref[...],
                     preferred_element_type=jnp.float32)

    rr = jnp.float32(0.001)
    y = y_ref[...].astype(jnp.float32)
    den = rr * y + 1.0
    inv_den = pl.reciprocal(den, approx=True) if approx_recip else 1.0 / den
    out = (logits + rr * y) * inv_den + b2_ref[...]
    out_ref[...] = out.astype(out_ref.dtype)


def alpha_office_forward(x_s, y_s, r, w1, b1, w2, b2, *, tile_b=None,
                         approx_reciprocal=True, out_dtype=jnp.float32):
    """x_s:(B,F)  y_s:(B,C)  r:(B,1)  w1:(F,H)  b1:(1,H)  w2:(H,C)  b2:(1,C)."""
    B, F = x_s.shape
    C = y_s.shape[1]
    H = w1.shape[1]

    default_tb, vmem_limit, deep_buf = _tpu_defaults()
    if tile_b is None:
        tile_b = default_tb

    # Hidden dim padded lane-dense (touches resident weights only, no streaming
    # cost).  F is left as-is: it equals the full array dim so the block is
    # legal; MXU handles a short contraction.
    Hp = _ceil_to(H, 128)

    # Batch tile: multiple of 16 (bf16 sublane packing of the cast x tile) and
    # at most ceil(B/2) so there are >=2 tiles for megacore once B >= 32.
    # TODO(synk): verify "parallel" shards this axis across v7x's two
    # TensorCores; otherwise switch to pltpu.CORE_PARALLEL on a leading axis.
    TB = min(tile_b, max(16, _ceil_to(-(-B // 2), 16)))
    Bp = _ceil_to(B, TB)
    n_tiles = Bp // TB

    f32, bf16 = jnp.float32, jnp.bfloat16

    # Resident (grid-invariant) parameters: one-time pad/cast, tiny.
    # PyTorch stores Linear weights (out, in); here they arrive as (in, out).
    w1_p = jnp.zeros((F, Hp), bf16).at[:, :H].set(w1.astype(bf16))
    b1_p = jnp.zeros((1, Hp), f32).at[:, :H].set(b1.reshape(1, H).astype(f32))
    w2_p = jnp.zeros((Hp, C), bf16).at[:H, :].set(w2.astype(bf16))
    b2_p = b2.reshape(1, C).astype(f32)

    # Streamed tensors pass through untouched; only the ragged batch tail is
    # padded (skipped entirely when B % TB == 0).
    if Bp != B:
        # TODO(synk): handle the ragged last tile with @pl.when masking instead
        # of a wrapper pad for very large, badly aligned B.
        pad = Bp - B
        x_in = jnp.pad(x_s, ((0, pad), (0, 0)))
        y_in = jnp.pad(y_s, ((0, pad), (0, 0)))
        r_in = jnp.pad(r, ((0, pad), (0, 0)), constant_values=1.0)
    else:
        x_in, y_in, r_in = x_s, y_s, r

    cost = pl.CostEstimate(
        flops=2 * Bp * (F * Hp + Hp * C),
        transcendentals=Bp * C,
        bytes_accessed=(Bp * F * x_in.dtype.itemsize
                        + w1_p.size * 2 + b1_p.size * 4
                        + w2_p.size * 2 + b2_p.size * 4
                        + Bp * C * y_in.dtype.itemsize
                        + Bp * r_in.dtype.itemsize
                        + Bp * C * jnp.dtype(out_dtype).itemsize),
    )

    kernel = functools.partial(alpha_office_kernel,
                               approx_recip=approx_reciprocal)

    def build(use_pipeline_modes):
        res_kw = {"pipeline_mode": pl.Buffered(1)} if use_pipeline_modes else {}
        str_kw = ({"pipeline_mode": pl.Buffered(3)}
                  if (use_pipeline_modes and deep_buf) else {})
        resident = lambda shape: pl.BlockSpec(shape, lambda i: (0, 0), **res_kw)
        stream = lambda shape: pl.BlockSpec(shape, lambda i: (i, 0), **str_kw)
        batch = lambda shape: pl.BlockSpec(shape, lambda i: (i, 0))
        return pl.pallas_call(
            kernel,
            out_shape=jax.ShapeDtypeStruct((Bp, C), out_dtype),
            grid=(n_tiles,),
            in_specs=[
                stream((TB, F)),        # x tile (dominant HBM stream)
                resident((F, Hp)),      # w1 (resident across batch tiles)
                resident((1, Hp)),      # b1
                resident((Hp, C)),      # w2
                resident((1, C)),       # b2
                stream((TB, C)),        # y tile (class dim left unpadded)
                batch((TB, 1)),         # r tile
            ],
            out_specs=batch((TB, C)),
            compiler_params=pltpu.CompilerParams(
                dimension_semantics=("parallel",),   # megacore on v7x
                vmem_limit_bytes=vmem_limit),
            cost_estimate=cost,
        )

    args = (x_in, w1_p, b1_p, w2_p, b2_p, y_in, r_in)
    try:
        # Single-buffer the grid-invariant weights (frees VMEM at production
        # sizes, esp. v7x) and deepen input buffering on v5e.
        out_p = jax.block_until_ready(build(True)(*args))
    except Exception:
        # pipeline_mode not supported by this JAX/Mosaic build: fall back to
        # default double-buffering (identical results).
        out_p = jax.block_until_ready(build(False)(*args))

    return out_p if Bp == B else out_p[:B]


def reference_forward(x_s, y_s, r, w1, b1, w2, b2):
    # Mirrors the kernel's numerics (bf16 MXU operands, f32 accumulation, r
    # folded into h before the second matmul) with an exact blend divide; the
    # kernel additionally uses an approx reciprocal (covered by tolerance).
    h = jnp.dot(x_s.astype(jnp.bfloat16), w1.astype(jnp.bfloat16),
                preferred_element_type=jnp.float32)
    h = jnp.maximum(h + b1, 0.0) * r
    logits = jnp.dot(h.astype(jnp.bfloat16), w2.astype(jnp.bfloat16),
                     preferred_element_type=jnp.float32)
    rr = 0.001
    return (logits + rr * y_s) / (rr * y_s + 1.0) + b2


if __name__ == "__main__":
    key = jax.random.PRNGKey(0)

    # Small shapes consistent with the module: num_ftrs=64 -> hidden=32, n_output=16.
    B, num_ftrs, n_output = 8, 64, 16
    hidden = num_ftrs // 2

    k1, k2, k3, k4, k5, k6, k7 = jax.random.split(key, 7)

    # Parameter init matching the module's uniform(-1/sqrt(in), 1/sqrt(in)).
    bnd1 = 1.0 / math.sqrt(num_ftrs)
    w1 = jax.random.uniform(k1, (num_ftrs, hidden), jnp.float32, -bnd1, bnd1)
    b1 = jax.random.uniform(k2, (1, hidden), jnp.float32, -bnd1, bnd1)

    bnd2 = 1.0 / math.sqrt(hidden)
    w2 = jax.random.uniform(k3, (hidden, n_output), jnp.float32, -bnd2, bnd2)
    b2 = jax.random.uniform(k4, (1, n_output), jnp.float32, -bnd2, bnd2)

    # Inputs.
    x_s = jax.random.normal(k5, (B, num_ftrs), jnp.float32)
    y_s = jax.nn.one_hot(
        jax.random.randint(k6, (B,), 0, n_output), n_output, dtype=jnp.float32)
    r = jax.random.uniform(k7, (B, 1), jnp.float32, 0.5, 1.5)

    out = alpha_office_forward(x_s, y_s, r, w1, b1, w2, b2)
    out = jax.block_until_ready(out)

    ref = reference_forward(x_s, y_s, r, w1, b1, w2, b2)
    assert out.shape == (B, n_output)
    # Tolerance covers the approx-reciprocal blend and bf16 MXU rounding.
    assert jnp.allclose(out, ref, atol=5e-3, rtol=5e-3), (
        float(jnp.max(jnp.abs(out - ref))))

    print("KERNEL_OK")
</pallas_src>

<mosaic_0001>
module attributes {stable_mosaic.version = 11 : i64} {
  func.func @alpha_office_kernel(%arg0: i32, %arg1: memref<16x64xf32, #tpu.memory_space<vmem>>, %arg2: memref<64x128xbf16, #tpu.memory_space<vmem>>, %arg3: memref<1x128xf32, #tpu.memory_space<vmem>>, %arg4: memref<128x16xbf16, #tpu.memory_space<vmem>>, %arg5: memref<1x16xf32, #tpu.memory_space<vmem>>, %arg6: memref<16x16xf32, #tpu.memory_space<vmem>>, %arg7: memref<16x1xf32, #tpu.memory_space<vmem>>, %arg8: memref<16x16xf32, #tpu.memory_space<vmem>>) attributes {dimension_semantics = [#tpu.dimension_semantics<parallel>], iteration_bounds = array<i64: 1>, scalar_prefetch = 0 : i64, scratch_operands = 0 : i64, tpu.core_type = #tpu.core_type<tc>, window_params = [{transform_indices = @transform_0, window_bounds = array<i64: 16, 64>}, {pipeline_mode = #tpu.pipeline_mode<synchronous>, transform_indices = @transform_1, window_bounds = array<i64: 64, 128>}, {pipeline_mode = #tpu.pipeline_mode<synchronous>, transform_indices = @transform_2, window_bounds = array<i64: 1, 128>}, {pipeline_mode = #tpu.pipeline_mode<synchronous>, transform_indices = @transform_3, window_bounds = array<i64: 128, 16>}, {pipeline_mode = #tpu.pipeline_mode<synchronous>, transform_indices = @transform_4, window_bounds = array<i64: 1, 16>}, {transform_indices = @transform_5, window_bounds = array<i64: 16, 16>}, {transform_indices = @transform_6, window_bounds = array<i64: 16, 1>}, {transform_indices = @transform_7, window_bounds = array<i64: 16, 16>}]} {
    %c0 = arith.constant 0 : index
    %c0_0 = arith.constant 0 : index
    %0 = vector.load %arg1[%c0, %c0_0] : memref<16x64xf32, #tpu.memory_space<vmem>>, vector<16x64xf32>
    %1 = arith.truncf %0 : vector<16x64xf32> to vector<16x64xbf16>
    %c0_1 = arith.constant 0 : index
    %c0_2 = arith.constant 0 : index
    %2 = vector.load %arg2[%c0_1, %c0_2] : memref<64x128xbf16, #tpu.memory_space<vmem>>, vector<64x128xbf16>
    %cst = arith.constant dense<0.000000e+00> : vector<16x128xf32>
    %3 = tpu.matmul %1, %2, %cst {dimension_numbers = #tpu.dot_dimension_numbers<[1], [0], [0], [1], [0, 0, 1, 1], [], []>} : vector<16x64xbf16>, vector<64x128xbf16>, vector<16x128xf32> -> vector<16x128xf32>
    %c0_3 = arith.constant 0 : index
    %c0_4 = arith.constant 0 : index
    %4 = vector.load %arg3[%c0_3, %c0_4] : memref<1x128xf32, #tpu.memory_space<vmem>>, vector<1x128xf32>
    %5 = vector.broadcast %4 : vector<1x128xf32> to vector<16x128xf32>
    %6 = arith.addf %3, %5 : vector<16x128xf32>
    %cst_5 = arith.constant 0.000000e+00 : f32
    %7 = vector.broadcast %cst_5 : f32 to vector<16x128xf32>
    %8 = arith.maximumf %6, %7 : vector<16x128xf32>
    %c0_6 = arith.constant 0 : index
    %c0_7 = arith.constant 0 : index
    %9 = vector.load %arg7[%c0_6, %c0_7] : memref<16x1xf32, #tpu.memory_space<vmem>>, vector<16x1xf32>
    %10 = vector.broadcast %9 : vector<16x1xf32> to vector<16x128xf32>
    %11 = arith.mulf %8, %10 : vector<16x128xf32>
    %12 = arith.truncf %11 : vector<16x128xf32> to vector<16x128xbf16>
    %c0_8 = arith.constant 0 : index
    %c0_9 = arith.constant 0 : index
    %13 = vector.load %arg4[%c0_8, %c0_9] : memref<128x16xbf16, #tpu.memory_space<vmem>>, vector<128x16xbf16>
    %cst_10 = arith.constant dense<0.000000e+00> : vector<16x16xf32>
    %14 = tpu.matmul %12, %13, %cst_10 {dimension_numbers = #tpu.dot_dimension_numbers<[1], [0], [0], [1], [0, 0, 1, 1], [], []>} : vector<16x128xbf16>, vector<128x16xbf16>, vector<16x16xf32> -> vector<16x16xf32>
    %c0_11 = arith.constant 0 : index
    %c0_12 = arith.constant 0 : index
    %15 = vector.load %arg6[%c0_11, %c0_12] : memref<16x16xf32, #tpu.memory_space<vmem>>, vector<16x16xf32>
    %cst_13 = arith.constant 1.000000e-03 : f32
    %16 = vector.broadcast %cst_13 : f32 to vector<16x16xf32>
    %17 = arith.mulf %16, %15 : vector<16x16xf32>
    %cst_14 = arith.constant 1.000000e+00 : f32
    %18 = vector.broadcast %cst_14 : f32 to vector<16x16xf32>
    %19 = arith.addf %17, %18 : vector<16x16xf32>
    %20 = tpu.reciprocal %19 {approx = true} : vector<16x16xf32> -> vector<16x16xf32>
    %cst_15 = arith.constant 1.000000e-03 : f32
    %21 = vector.broadcast %cst_15 : f32 to vector<16x16xf32>
    %22 = arith.mulf %21, %15 : vector<16x16xf32>
    %23 = arith.addf %14, %22 : vector<16x16xf32>
    %24 = arith.mulf %23, %20 : vector<16x16xf32>
    %c0_16 = arith.constant 0 : index
    %c0_17 = arith.constant 0 : index
    %25 = vector.load %arg5[%c0_16, %c0_17] : memref<1x16xf32, #tpu.memory_space<vmem>>, vector<1x16xf32>
    %26 = vector.broadcast %25 : vector<1x16xf32> to vector<16x16xf32>
    %27 = arith.addf %24, %26 : vector<16x16xf32>
    %c0_18 = arith.constant 0 : index
    %c0_19 = arith.constant 0 : index
    %28 = vector.load %arg8[%c0_18, %c0_19] : memref<16x16xf32, #tpu.memory_space<vmem>>, vector<16x16xf32>
    tpu.vector_store %arg8[%c0_18, %c0_19], %27 {strides = array<i32>} : memref<16x16xf32, #tpu.memory_space<vmem>>, vector<16x16xf32>,
    return
  }
  func.func @transform_0(%arg0: i32) -> (i32, i32) {
    %c0_i32 = arith.constant 0 : i32
    %c0_i32_0 = arith.constant 0 : i32
    return %arg0, %c0_i32 : i32, i32
  }
  func.func @transform_1(%arg0: i32) -> (i32, i32) {
    %c0_i32 = arith.constant 0 : i32
    %c0_i32_0 = arith.constant 0 : i32
    %c0_i32_1 = arith.constant 0 : i32
    return %c0_i32, %c0_i32_0 : i32, i32
  }
  func.func @transform_2(%arg0: i32) -> (i32, i32) {
    %c0_i32 = arith.constant 0 : i32
    %c0_i32_0 = arith.constant 0 : i32
    %c0_i32_1 = arith.constant 0 : i32
    return %c0_i32, %c0_i32_0 : i32, i32
  }
  func.func @transform_3(%arg0: i32) -> (i32, i32) {
    %c0_i32 = arith.constant 0 : i32
    %c0_i32_0 = arith.constant 0 : i32
    %c0_i32_1 = arith.constant 0 : i32
    return %c0_i32, %c0_i32_0 : i32, i32
  }
  func.func @transform_4(%arg0: i32) -> (i32, i32) {
    %c0_i32 = arith.constant 0 : i32
    %c0_i32_0 = arith.constant 0 : i32
    %c0_i32_1 = arith.constant 0 : i32
    return %c0_i32, %c0_i32_0 : i32, i32
  }
  func.func @transform_5(%arg0: i32) -> (i32, i32) {
    %c0_i32 = arith.constant 0 : i32
    %c0_i32_0 = arith.constant 0 : i32
    return %arg0, %c0_i32 : i32, i32
  }
  func.func @transform_6(%arg0: i32) -> (i32, i32) {
    %c0_i32 = arith.constant 0 : i32
    %c0_i32_0 = arith.constant 0 : i32
    return %arg0, %c0_i32 : i32, i32
  }
  func.func @transform_7(%arg0: i32) -> (i32, i32) {
    %c0_i32 = arith.constant 0 : i32
    %c0_i32_0 = arith.constant 0 : i32
    return %arg0, %c0_i32 : i32, i32
  }
}

module attributes {stable_mosaic.version = 11 : i64} {
  func.func @alpha_office_kernel(%arg0: i32, %arg1: memref<16x64xf32, #tpu.memory_space<vmem>>, %arg2: memref<64x128xbf16, #tpu.memory_space<vmem>>, %arg3: memref<1x128xf32, #tpu.memory_space<vmem>>, %arg4: memref<128x16xbf16, #tpu.memory_space<vmem>>, %arg5: memref<1x16xf32, #tpu.memory_space<vmem>>, %arg6: memref<16x16xf32, #tpu.memory_space<vmem>>, %arg7: memref<16x1xf32, #tpu.memory_space<vmem>>, %arg8: memref<16x16xf32, #tpu.memory_space<vmem>>) attributes {dimension_semantics = [#tpu.dimension_semantics<parallel>], iteration_bounds = array<i64: 1>, scalar_prefetch = 0 : i64, scratch_operands = 0 : i64, tpu.core_type = #tpu.core_type<tc>, window_params = [{transform_indices = @transform_0, window_bounds = array<i64: 16, 64>}, {pipeline_mode = #tpu.pipeline_mode<synchronous>, transform_indices = @transform_1, window_bounds = array<i64: 64, 128>}, {pipeline_mode = #tpu.pipeline_mode<synchronous>, transform_indices = @transform_2, window_bounds = array<i64: 1, 128>}, {pipeline_mode = #tpu.pipeline_mode<synchronous>, transform_indices = @transform_3, window_bounds = array<i64: 128, 16>}, {pipeline_mode = #tpu.pipeline_mode<synchronous>, transform_indices = @transform_4, window_bounds = array<i64: 1, 16>}, {transform_indices = @transform_5, window_bounds = array<i64: 16, 16>}, {transform_indices = @transform_6, window_bounds = array<i64: 16, 1>}, {transform_indices = @transform_7, window_bounds = array<i64: 16, 16>}]} {
    %c0 = arith.constant 0 : index
    %c0_0 = arith.constant 0 : index
    %0 = vector.load %arg1[%c0, %c0_0] : memref<16x64xf32, #tpu.memory_space<vmem>>, vector<16x64xf32>
    %1 = arith.truncf %0 : vector<16x64xf32> to vector<16x64xbf16>
    %c0_1 = arith.constant 0 : index
    %c0_2 = arith.constant 0 : index
    %2 = vector.load %arg2[%c0_1, %c0_2] : memref<64x128xbf16, #tpu.memory_space<vmem>>, vector<64x128xbf16>
    %cst = arith.constant dense<0.000000e+00> : vector<16x128xf32>
    %3 = tpu.matmul %1, %2, %cst {dimension_numbers = #tpu.dot_dimension_numbers<[1], [0], [0], [1], [0, 0, 1, 1], [], []>} : vector<16x64xbf16>, vector<64x128xbf16>, vector<16x128xf32> -> vector<16x128xf32>
    %c0_3 = arith.constant 0 : index
    %c0_4 = arith.constant 0 : index
    %4 = vector.load %arg3[%c0_3, %c0_4] : memref<1x128xf32, #tpu.memory_space<vmem>>, vector<1x128xf32>
    %5 = vector.broadcast %4 : vector<1x128xf32> to vector<16x128xf32>
    %6 = arith.addf %3, %5 : vector<16x128xf32>
    %cst_5 = arith.constant 0.000000e+00 : f32
    %7 = vector.broadcast %cst_5 : f32 to vector<16x128xf32>
    %8 = arith.maximumf %6, %7 : vector<16x128xf32>
    %c0_6 = arith.constant 0 : index
    %c0_7 = arith.constant 0 : index
    %9 = vector.load %arg7[%c0_6, %c0_7] : memref<16x1xf32, #tpu.memory_space<vmem>>, vector<16x1xf32>
    %10 = vector.broadcast %9 : vector<16x1xf32> to vector<16x128xf32>
    %11 = arith.mulf %8, %10 : vector<16x128xf32>
    %12 = arith.truncf %11 : vector<16x128xf32> to vector<16x128xbf16>
    %c0_8 = arith.constant 0 : index
    %c0_9 = arith.constant 0 : index
    %13 = vector.load %arg4[%c0_8, %c0_9] : memref<128x16xbf16, #tpu.memory_space<vmem>>, vector<128x16xbf16>
    %cst_10 = arith.constant dense<0.000000e+00> : vector<16x16xf32>
    %14 = tpu.matmul %12, %13, %cst_10 {dimension_numbers = #tpu.dot_dimension_numbers<[1], [0], [0], [1], [0, 0, 1, 1], [], []>} : vector<16x128xbf16>, vector<128x16xbf16>, vector<16x16xf32> -> vector<16x16xf32>
    %c0_11 = arith.constant 0 : index
    %c0_12 = arith.constant 0 : index
    %15 = vector.load %arg6[%c0_11, %c0_12] : memref<16x16xf32, #tpu.memory_space<vmem>>, vector<16x16xf32>
    %cst_13 = arith.constant 1.000000e-03 : f32
    %16 = vector.broadcast %cst_13 : f32 to vector<16x16xf32>
    %17 = arith.mulf %16, %15 : vector<16x16xf32>
    %cst_14 = arith.constant 1.000000e+00 : f32
    %18 = vector.broadcast %cst_14 : f32 to vector<16x16xf32>
    %19 = arith.addf %17, %18 : vector<16x16xf32>
    %20 = tpu.reciprocal %19 {approx = true} : vector<16x16xf32> -> vector<16x16xf32>
    %cst_15 = arith.constant 1.000000e-03 : f32
    %21 = vector.broadcast %cst_15 : f32 to vector<16x16xf32>
    %22 = arith.mulf %21, %15 : vector<16x16xf32>
    %23 = arith.addf %14, %22 : vector<16x16xf32>
    %24 = arith.mulf %23, %20 : vector<16x16xf32>
    %c0_16 = arith.constant 0 : index
    %c0_17 = arith.constant 0 : index
    %25 = vector.load %arg5[%c0_16, %c0_17] : memref<1x16xf32, #tpu.memory_space<vmem>>, vector<1x16xf32>
    %26 = vector.broadcast %25 : vector<1x16xf32> to vector<16x16xf32>
    %27 = arith.addf %24, %26 : vector<16x16xf32>
    %c0_18 = arith.constant 0 : index
    %c0_19 = arith.constant 0 : index
    %28 = vector.load %arg8[%c0_18, %c0_19] : memref<16x16xf32, #tpu.memory_space<vmem>>, vector<16x16xf32>
    tpu.vector_store %arg8[%c0_18, %c0_19], %27 {strides = array<i32>} : memref<16x16xf32, #tpu.memory_space<vmem>>, vector<16x16xf32>,
    return
  }
  func.func @transform_0(%arg0: i32) -> (i32, i32) {
    %c0_i32 = arith.constant 0 : i32
    %c0_i32_0 = arith.constant 0 : i32
    return %arg0, %c0_i32 : i32, i32
  }
  func.func @transform_1(%arg0: i32) -> (i32, i32) {
    %c0_i32 = arith.constant 0 : i32
    %c0_i32_0 = arith.constant 0 : i32
    %c0_i32_1 = arith.constant 0 : i32
    return %c0_i32, %c0_i32_0 : i32, i32
  }
  func.func @transform_2(%arg0: i32) -> (i32, i32) {
    %c0_i32 = arith.constant 0 : i32
    %c0_i32_0 = arith.constant 0 : i32
    %c0_i32_1 = arith.constant 0 : i32
    return %c0_i32, %c0_i32_0 : i32, i32
  }
  func.func @transform_3(%arg0: i32) -> (i32, i32) {
    %c0_i32 = arith.constant 0 : i32
    %c0_i32_0 = arith.constant 0 : i32
    %c0_i32_1 = arith.constant 0 : i32
    return %c0_i32, %c0_i32_0 : i32, i32
  }
  func.func @transform_4(%arg0: i32) -> (i32, i32) {
    %c0_i32 = arith.constant 0 : i32
    %c0_i32_0 = arith.constant 0 : i32
    %c0_i32_1 = arith.constant 0 : i32
    return %c0_i32, %c0_i32_0 : i32, i32
  }
  func.func @transform_5(%arg0: i32) -> (i32, i32) {
    %c0_i32 = arith.constant 0 : i32
    %c0_i32_0 = arith.constant 0 : i32
    return %arg0, %c0_i32 : i32, i32
  }
  func.func @transform_6(%arg0: i32) -> (i32, i32) {
    %c0_i32 = arith.constant 0 : i32
    %c0_i32_0 = arith.constant 0 : i32
    return %arg0, %c0_i32 : i32, i32
  }
  func.func @transform_7(%arg0: i32) -> (i32, i32) {
    %c0_i32 = arith.constant 0 : i32
    %c0_i32_0 = arith.constant 0 : i32
    return %arg0, %c0_i32 : i32, i32
  }
}

</mosaic_0001>

<llo_original>
// kernel: tpu_custom_call.1
$region0: #{tpu_custom_call.1}
  #allocation0 [shape = 'u32[]', space=smem, size = 0x4, offset = 0x4, fixed_abs, tag = 'smem constant byte address 0x4 - core index']
  #allocation1 [shape = 'u32[72,128]{1,0:T(1,128)}', space=vmem, size = 0x9000, scoped, tag = 'internal scratch']
  %s0 = inlined_call_operand.vmem [shape: f32[16,64], index: 0, kind: input, shape index: {}]
  %s1 = inlined_call_operand.vmem [shape: bf16[64,128], index: 1, kind: input, shape index: {}]
  %s2 = inlined_call_operand.vmem [shape: f32[1,128], index: 2, kind: input, shape index: {}]
  %s3 = inlined_call_operand.vmem [shape: bf16[128,16], index: 3, kind: input, shape index: {}]
  %s4 = inlined_call_operand.vmem [shape: f32[1,16], index: 4, kind: input, shape index: {}]
  %s5 = inlined_call_operand.vmem [shape: f32[16,16], index: 5, kind: input, shape index: {}]
  %s6 = inlined_call_operand.vmem [shape: f32[16,1], index: 6, kind: input, shape index: {}]
  %s7 = inlined_call_operand.hbm [shape: f32[16,16], index: 7, kind: output, shape index: {}]
  %s8 = sld [smem:[#allocation0]]
  $region38: #{tpu_custom_call.1} parent=0
    _
  %s10 = ssub.s32 1, %s8
  %s11 = scalar_select 0, %s10, %s8
  $region1: #{tpu_custom_call.1} parent=0
    #allocation2 [shape = 'u8[8192]{0}', space=vmem, size = 0x2000, scoped, tag = 'output window, operand 0, single buffered']
    #allocation3 [shape = 's32[1]{0}', space=sflag, size = 0x4, scoped, tag = 'scoped memory for tpu_custom_call.1']
    %12 = vsyncpa [#allocation3], 0
    // Predicated region
    $region2: #{tpu_custom_call.1} parent=1 // pred_check
      _
    $region3: #{tpu_custom_call.1} parent=1 // pred_check_branch
      %14 = sbr.rel (0) target = $region5
    $region4: #{tpu_custom_call.1} parent=1 // pred_region
      _
    $region5: #{tpu_custom_call.1} parent=1 // pred_fallthru
      _
    // Predicated region
    $region6: #{tpu_custom_call.1} parent=1 // pred_check
      _
    $region7: #{tpu_custom_call.1} parent=1 // pred_check_branch
      %16 = sbr.rel (0) target = $region9
    $region8: #{tpu_custom_call.1} parent=1 // pred_region
      _
    $region9: #{tpu_custom_call.1} parent=1 // pred_fallthru
      _
    // Predicated region
    $region10: #{tpu_custom_call.1} parent=1 // pred_check
      _
    $region11: #{tpu_custom_call.1} parent=1 // pred_check_branch
      %18 = sbr.rel (0) target = $region13
    $region12: #{tpu_custom_call.1} parent=1 // pred_region
      _
    $region13: #{tpu_custom_call.1} parent=1 // pred_fallthru
      _
    // Predicated region
    $region14: #{tpu_custom_call.1} parent=1 // pred_check
      _
    $region15: #{tpu_custom_call.1} parent=1 // pred_check_branch
      %20 = sbr.rel (0) target = $region17
    $region16: #{tpu_custom_call.1} parent=1 // pred_region
      _
    $region17: #{tpu_custom_call.1} parent=1 // pred_fallthru
      _
    // Predicated region
    $region18: #{tpu_custom_call.1} parent=1 // pred_check
      _
    $region19: #{tpu_custom_call.1} parent=1 // pred_check_branch
      %22 = sbr.rel (0) target = $region21
    $region20: #{tpu_custom_call.1} parent=1 // pred_region
      _
    $region21: #{tpu_custom_call.1} parent=1 // pred_fallthru
      _
    // Predicated region
    $region22: #{tpu_custom_call.1} parent=1 // pred_check
      _
    $region23: #{tpu_custom_call.1} parent=1 // pred_check_branch
      %24 = sbr.rel (0) target = $region25
    $region24: #{tpu_custom_call.1} parent=1 // pred_region
      _
    $region25: #{tpu_custom_call.1} parent=1 // pred_fallthru
      _
    // Predicated region
    $region26: #{tpu_custom_call.1} parent=1 // pred_check
      _
    $region27: #{tpu_custom_call.1} parent=1 // pred_check_branch
      %26 = sbr.rel (0) target = $region29
    $region28: #{tpu_custom_call.1} parent=1 // pred_region
      _
    $region29: #{tpu_custom_call.1} parent=1 // pred_fallthru
      _
    %v28 = vld [vmem:[%s0] sm:$0xff]
    %v29 = vld [vmem:[%s0 + $0x8] sm:$0xff]
    %v30 = vpack.c.bf16 %v29, %v28
    %v31 = vld [vmem:[%s1] sm:$0xf]
    %v32 = vld [vmem:[%s1 + $0x4] sm:$0xf]
    %v33 = vld [vmem:[%s1 + $0x8] sm:$0xf]
    %v34 = vld [vmem:[%s1 + $0xc] sm:$0xf]
    %v35 = vld [vmem:[%s1 + $0x10] sm:$0xf]
    %v36 = vld [vmem:[%s1 + $0x14] sm:$0xf]
    %v37 = vld [vmem:[%s1 + $0x18] sm:$0xf]
    %v38 = vld [vmem:[%s1 + $0x1c] sm:$0xf]
    %v39 = vld [vmem:[%s2] sm:$0x1]
    %v41 = vperm.slane %v39, 0
    %v51 = vunpack.c.l.b16 %v31
    %v52 = vunpack.c.l.b16 %v32
    %v53 = vunpack.c.l.b16 %v33
    %v54 = vunpack.c.l.b16 %v34
    %v55 = vunpack.c.l.b16 %v35
    %v56 = vunpack.c.l.b16 %v36
    %v57 = vunpack.c.l.b16 %v37
    %v58 = vunpack.c.l.b16 %v38
    %v59 = vpack.c.b16 %v52, %v51
    %v60 = vpack.c.b16 %v54, %v53
    %v61 = vpack.c.b16 %v56, %v55
    %v62 = vpack.c.b16 %v58, %v57
    %vm67 = vcmask 523264
    %v69 = vsel %vm67, %v30, 0
    %71 = vmatpush.bf16.msra.mxu0 0
    %72 = vmatpush.bf16.msra.mxu0 0
    %73 = vmatpush.bf16.msra.mxu0 0
    %74 = vmatpush.bf16.msra.mxu0 0
    %75 = vmatpush.bf16.msra.mxu0 %v62
    %76 = vmatpush.bf16.msra.mxu0 %v61
    %77 = vmatpush.bf16.msra.mxu0 %v60
    %78 = vmatpush.bf16.msra.mxu0 %v59
    %79 = vmatmul.bf16.gmra.mxu0 %v69
    %v80 = vpop.f32.mrf.mxu0
    %v81 = vadd.f32 %v41, %v80
    %v82 = vpop.f32.mrf.mxu0
    %v83 = vadd.f32 %v41, %v82
    %84 = vdwg.mxu0
    %v85 = vmax.f32 %v81, 0.0
    %v86 = vmax.f32 %v83, 0.0
    %v87 = vld [vmem:[%s6] sm:$0xff]
    %v88 = vld [vmem:[%s6 + $0x8] sm:$0xff]
    %90 = vset.pattern.permute.xlu0 0
    %91 = vperm.xlu0 %90, %v87
    %v92 = vpop.permute.xlu0 %91
    %95 = vset.pattern.permute.xlu0 0
    %96 = vperm.xlu0 %95, %v88
    %v97 = vpop.permute.xlu0 %96
    %v99 = vmul.f32 %v85, %v92
    %v100 = vmul.f32 %v86, %v97
    %v101 = vpack.c.bf16 %v100, %v99
    %v102 = vld [vmem:[%s3] sm:$0xf]
    %v103 = vld [vmem:[%s3 + $0x4] sm:$0xf]
    %v104 = vld [vmem:[%s3 + $0x8] sm:$0xf]
    %v105 = vld [vmem:[%s3 + $0xc] sm:$0xf]
    %v106 = vld [vmem:[%s3 + $0x10] sm:$0xf]
    %v107 = vld [vmem:[%s3 + $0x14] sm:$0xf]
    %v108 = vld [vmem:[%s3 + $0x18] sm:$0xf]
    %v109 = vld [vmem:[%s3 + $0x1c] sm:$0xf]
    %v110 = vld [vmem:[%s3 + $0x20] sm:$0xf]
    %v111 = vld [vmem:[%s3 + $0x24] sm:$0xf]
    %v112 = vld [vmem:[%s3 + $0x28] sm:$0xf]
    %v113 = vld [vmem:[%s3 + $0x2c] sm:$0xf]
    %v114 = vld [vmem:[%s3 + $0x30] sm:$0xf]
    %v115 = vld [vmem:[%s3 + $0x34] sm:$0xf]
    %v116 = vld [vmem:[%s3 + $0x38] sm:$0xf]
    %v117 = vld [vmem:[%s3 + $0x3c] sm:$0xf]
    %v118 = vld [vmem:[%s5] sm:$0xff]
    %v119 = vld [vmem:[%s5 + $0x8] sm:$0xff]
    %v120 = vmul.f32 %v118, 0.001
    %v121 = vmul.f32 %v119, 0.001
    %v122 = vadd.f32 %v120, 1.0
    %v123 = vadd.f32 %v121, 1.0
    %v124 = vrcp.pop %v122
    %v125 = vrcp.pop %v123
    %v142 = vunpack.c.l.b16 %v102
    %v143 = vunpack.c.l.b16 %v103
    %v144 = vunpack.c.l.b16 %v104
    %v145 = vunpack.c.l.b16 %v105
    %v146 = vunpack.c.l.b16 %v106
    %v147 = vunpack.c.l.b16 %v107
    %v148 = vunpack.c.l.b16 %v108
    %v149 = vunpack.c.l.b16 %v109
    %v150 = vunpack.c.l.b16 %v110
    %v151 = vunpack.c.l.b16 %v111
    %v152 = vunpack.c.l.b16 %v112
    %v153 = vunpack.c.l.b16 %v113
    %v154 = vunpack.c.l.b16 %v114
    %v155 = vunpack.c.l.b16 %v115
    %v156 = vunpack.c.l.b16 %v116
    %v157 = vunpack.c.l.b16 %v117
    %v158 = vpack.c.b16 %v143, %v142
    %v159 = vpack.c.b16 %v145, %v144
    %v160 = vpack.c.b16 %v147, %v146
    %v161 = vpack.c.b16 %v149, %v148
    %v162 = vpack.c.b16 %v151, %v150
    %v163 = vpack.c.b16 %v153, %v152
    %v164 = vpack.c.b16 %v155, %v154
    %v165 = vpack.c.b16 %v157, %v156
    %174 = vmatpush.bf16.msra.mxu0 %v165
    %175 = vmatpush.bf16.msra.mxu0 %v164
    %176 = vmatpush.bf16.msra.mxu0 %v163
    %177 = vmatpush.bf16.msra.mxu0 %v162
    %178 = vmatpush.bf16.msra.mxu0 %v161
    %179 = vmatpush.bf16.msra.mxu0 %v160
    %180 = vmatpush.bf16.msra.mxu0 %v159
    %181 = vmatpush.bf16.msra.mxu0 %v158
    %182 = vmatmul.bf16.gmra.mxu0 %v101
    %v183 = vpop.f32.mrf.mxu0
    %v184 = vadd.f32 %v120, %v183
    %v185 = vpop.f32.mrf.mxu0
    %v186 = vadd.f32 %v121, %v185
    %187 = vdwg.mxu0
    %v188 = vmul.f32 %v184, %v124
    %v189 = vmul.f32 %v186, %v125
    %v190 = vld [vmem:[%s4] sm:$0x1]
    %v192 = vperm.slane %v190, 0
    %v194 = vadd.f32 %v188, %v192
    %v195 = vadd.f32 %v189, %v192
    %vm196 = vcmask 130048
    %197 = vst.msk [vmem:[#allocation2] sm:$0xff] %vm196, %v194
    %198 = vst.msk [vmem:[#allocation2 + $0x8] sm:$0xff] %vm196, %v195
    // Predicated region
    $region30: #{tpu_custom_call.1} parent=1 // pred_check
      _
    $region31: #{tpu_custom_call.1} parent=1 // pred_check_branch
      %200 = sbr.rel (0) target = $region33
    $region32: #{tpu_custom_call.1} parent=1 // pred_region
      %202 = vsyncadd [#allocation3], 0
      %s203 = sshll.u32 [#allocation2], 4
      %s204 = int_to_ptr.vmem [resolvable:$true] %s203
      %s205 = sshll.u32 %s7, 4
      %s206 = int_to_ptr.hbm [resolvable:$true] %s205
      %211 = dma.vmem_to_hbm [thread:$0]  %s204, 256, %s206, [#allocation3], 128, 128, 8
    $region33: #{tpu_custom_call.1} parent=1 // pred_fallthru
      _
    // Predicated region
    $region34: #{tpu_custom_call.1} parent=1 // pred_check
      _
    $region35: #{tpu_custom_call.1} parent=1 // pred_check_branch
      %213 = sbr.rel (0) target = $region37
    $region36: #{tpu_custom_call.1} parent=1 // pred_region
      %215 = dma.done [#allocation3], 256
    $region37: #{tpu_custom_call.1} parent=1 // pred_fallthru
      _
    %216 = vsyncpa [#allocation3], 1

// kernel: tpu_custom_call.1
$region0: #{tpu_custom_call.1}
  #allocation0 [shape = 'u32[]', space=smem, size = 0x4, offset = 0x4, fixed_abs, tag = 'smem constant byte address 0x4 - core index']
  #allocation1 [shape = 'u32[72,128]{1,0:T(1,128)}', space=vmem, size = 0x9000, scoped, tag = 'internal scratch']
  %s0 = inlined_call_operand.vmem [shape: f32[16,64], index: 0, kind: input, shape index: {}]
  %s1 = inlined_call_operand.vmem [shape: bf16[64,128], index: 1, kind: input, shape index: {}]
  %s2 = inlined_call_operand.vmem [shape: f32[1,128], index: 2, kind: input, shape index: {}]
  %s3 = inlined_call_operand.vmem [shape: bf16[128,16], index: 3, kind: input, shape index: {}]
  %s4 = inlined_call_operand.vmem [shape: f32[1,16], index: 4, kind: input, shape index: {}]
  %s5 = inlined_call_operand.vmem [shape: f32[16,16], index: 5, kind: input, shape index: {}]
  %s6 = inlined_call_operand.vmem [shape: f32[16,1], index: 6, kind: input, shape index: {}]
  %s7 = inlined_call_operand.hbm [shape: f32[16,16], index: 7, kind: output, shape index: {}]
  %s8 = sld [smem:[#allocation0]]
  $region38: #{tpu_custom_call.1} parent=0
    _
  %s10 = ssub.s32 1, %s8
  %s11 = scalar_select 0, %s10, %s8
  $region1: #{tpu_custom_call.1} parent=0
    #allocation2 [shape = 'u8[8192]{0}', space=vmem, size = 0x2000, scoped, tag = 'output window, operand 0, single buffered']
    #allocation3 [shape = 's32[1]{0}', space=sflag, size = 0x4, scoped, tag = 'scoped memory for tpu_custom_call.1']
    %12 = vsyncpa [#allocation3], 0
    // Predicated region
    $region2: #{tpu_custom_call.1} parent=1 // pred_check
      _
    $region3: #{tpu_custom_call.1} parent=1 // pred_check_branch
      %14 = sbr.rel (0) target = $region5
    $region4: #{tpu_custom_call.1} parent=1 // pred_region
      _
    $region5: #{tpu_custom_call.1} parent=1 // pred_fallthru
      _
    // Predicated region
    $region6: #{tpu_custom_call.1} parent=1 // pred_check
      _
    $region7: #{tpu_custom_call.1} parent=1 // pred_check_branch
      %16 = sbr.rel (0) target = $region9
    $region8: #{tpu_custom_call.1} parent=1 // pred_region
      _
    $region9: #{tpu_custom_call.1} parent=1 // pred_fallthru
      _
    // Predicated region
    $region10: #{tpu_custom_call.1} parent=1 // pred_check
      _
    $region11: #{tpu_custom_call.1} parent=1 // pred_check_branch
      %18 = sbr.rel (0) target = $region13
    $region12: #{tpu_custom_call.1} parent=1 // pred_region
      _
    $region13: #{tpu_custom_call.1} parent=1 // pred_fallthru
      _
    // Predicated region
    $region14: #{tpu_custom_call.1} parent=1 // pred_check
      _
    $region15: #{tpu_custom_call.1} parent=1 // pred_check_branch
      %20 = sbr.rel (0) target = $region17
    $region16: #{tpu_custom_call.1} parent=1 // pred_region
      _
    $region17: #{tpu_custom_call.1} parent=1 // pred_fallthru
      _
    // Predicated region
    $region18: #{tpu_custom_call.1} parent=1 // pred_check
      _
    $region19: #{tpu_custom_call.1} parent=1 // pred_check_branch
      %22 = sbr.rel (0) target = $region21
    $region20: #{tpu_custom_call.1} parent=1 // pred_region
      _
    $region21: #{tpu_custom_call.1} parent=1 // pred_fallthru
      _
    // Predicated region
    $region22: #{tpu_custom_call.1} parent=1 // pred_check
      _
    $region23: #{tpu_custom_call.1} parent=1 // pred_check_branch
      %24 = sbr.rel (0) target = $region25
    $region24: #{tpu_custom_call.1} parent=1 // pred_region
      _
    $region25: #{tpu_custom_call.1} parent=1 // pred_fallthru
      _
    // Predicated region
    $region26: #{tpu_custom_call.1} parent=1 // pred_check
      _
    $region27: #{tpu_custom_call.1} parent=1 // pred_check_branch
      %26 = sbr.rel (0) target = $region29
    $region28: #{tpu_custom_call.1} parent=1 // pred_region
      _
    $region29: #{tpu_custom_call.1} parent=1 // pred_fallthru
      _
    %v28 = vld [vmem:[%s0] sm:$0xff]
    %v29 = vld [vmem:[%s0 + $0x8] sm:$0xff]
    %v30 = vpack.c.bf16 %v29, %v28
    %v31 = vld [vmem:[%s1] sm:$0xf]
    %v32 = vld [vmem:[%s1 + $0x4] sm:$0xf]
    %v33 = vld [vmem:[%s1 + $0x8] sm:$0xf]
    %v34 = vld [vmem:[%s1 + $0xc] sm:$0xf]
    %v35 = vld [vmem:[%s1 + $0x10] sm:$0xf]
    %v36 = vld [vmem:[%s1 + $0x14] sm:$0xf]
    %v37 = vld [vmem:[%s1 + $0x18] sm:$0xf]
    %v38 = vld [vmem:[%s1 + $0x1c] sm:$0xf]
    %v39 = vld [vmem:[%s2] sm:$0x1]
    %v41 = vperm.slane %v39, 0
    %v51 = vunpack.c.l.b16 %v31
    %v52 = vunpack.c.l.b16 %v32
    %v53 = vunpack.c.l.b16 %v33
    %v54 = vunpack.c.l.b16 %v34
    %v55 = vunpack.c.l.b16 %v35
    %v56 = vunpack.c.l.b16 %v36
    %v57 = vunpack.c.l.b16 %v37
    %v58 = vunpack.c.l.b16 %v38
    %v59 = vpack.c.b16 %v52, %v51
    %v60 = vpack.c.b16 %v54, %v53
    %v61 = vpack.c.b16 %v56, %v55
    %v62 = vpack.c.b16 %v58, %v57
    %vm67 = vcmask 523264
    %v69 = vsel %vm67, %v30, 0
    %71 = vmatpush.bf16.msra.mxu0 0
    %72 = vmatpush.bf16.msra.mxu0 0
    %73 = vmatpush.bf16.msra.mxu0 0
    %74 = vmatpush.bf16.msra.mxu0 0
    %75 = vmatpush.bf16.msra.mxu0 %v62
    %76 = vmatpush.bf16.msra.mxu0 %v61
    %77 = vmatpush.bf16.msra.mxu0 %v60
    %78 = vmatpush.bf16.msra.mxu0 %v59
    %79 = vmatmul.bf16.gmra.mxu0 %v69
    %v80 = vpop.f32.mrf.mxu0
    %v81 = vadd.f32 %v41, %v80
    %v82 = vpop.f32.mrf.mxu0
    %v83 = vadd.f32 %v41, %v82
    %84 = vdwg.mxu0
    %v85 = vmax.f32 %v81, 0.0
    %v86 = vmax.f32 %v83, 0.0
    %v87 = vld [vmem:[%s6] sm:$0xff]
    %v88 = vld [vmem:[%s6 + $0x8] sm:$0xff]
    %90 = vset.pattern.permute.xlu0 0
    %91 = vperm.xlu0 %90, %v87
    %v92 = vpop.permute.xlu0 %91
    %95 = vset.pattern.permute.xlu0 0
    %96 = vperm.xlu0 %95, %v88
    %v97 = vpop.permute.xlu0 %96
    %v99 = vmul.f32 %v85, %v92
    %v100 = vmul.f32 %v86, %v97
    %v101 = vpack.c.bf16 %v100, %v99
    %v102 = vld [vmem:[%s3] sm:$0xf]
    %v103 = vld [vmem:[%s3 + $0x4] sm:$0xf]
    %v104 = vld [vmem:[%s3 + $0x8] sm:$0xf]
    %v105 = vld [vmem:[%s3 + $0xc] sm:$0xf]
    %v106 = vld [vmem:[%s3 + $0x10] sm:$0xf]
    %v107 = vld [vmem:[%s3 + $0x14] sm:$0xf]
    %v108 = vld [vmem:[%s3 + $0x18] sm:$0xf]
    %v109 = vld [vmem:[%s3 + $0x1c] sm:$0xf]
    %v110 = vld [vmem:[%s3 + $0x20] sm:$0xf]
    %v111 = vld [vmem:[%s3 + $0x24] sm:$0xf]
    %v112 = vld [vmem:[%s3 + $0x28] sm:$0xf]
    %v113 = vld [vmem:[%s3 + $0x2c] sm:$0xf]
    %v114 = vld [vmem:[%s3 + $0x30] sm:$0xf]
    %v115 = vld [vmem:[%s3 + $0x34] sm:$0xf]
    %v116 = vld [vmem:[%s3 + $0x38] sm:$0xf]
    %v117 = vld [vmem:[%s3 + $0x3c] sm:$0xf]
    %v118 = vld [vmem:[%s5] sm:$0xff]
    %v119 = vld [vmem:[%s5 + $0x8] sm:$0xff]
    %v120 = vmul.f32 %v118, 0.001
    %v121 = vmul.f32 %v119, 0.001
    %v122 = vadd.f32 %v120, 1.0
    %v123 = vadd.f32 %v121, 1.0
    %v124 = vrcp.pop %v122
    %v125 = vrcp.pop %v123
    %v142 = vunpack.c.l.b16 %v102
    %v143 = vunpack.c.l.b16 %v103
    %v144 = vunpack.c.l.b16 %v104
    %v145 = vunpack.c.l.b16 %v105
    %v146 = vunpack.c.l.b16 %v106
    %v147 = vunpack.c.l.b16 %v107
    %v148 = vunpack.c.l.b16 %v108
    %v149 = vunpack.c.l.b16 %v109
    %v150 = vunpack.c.l.b16 %v110
    %v151 = vunpack.c.l.b16 %v111
    %v152 = vunpack.c.l.b16 %v112
    %v153 = vunpack.c.l.b16 %v113
    %v154 = vunpack.c.l.b16 %v114
    %v155 = vunpack.c.l.b16 %v115
    %v156 = vunpack.c.l.b16 %v116
    %v157 = vunpack.c.l.b16 %v117
    %v158 = vpack.c.b16 %v143, %v142
    %v159 = vpack.c.b16 %v145, %v144
    %v160 = vpack.c.b16 %v147, %v146
    %v161 = vpack.c.b16 %v149, %v148
    %v162 = vpack.c.b16 %v151, %v150
    %v163 = vpack.c.b16 %v153, %v152
    %v164 = vpack.c.b16 %v155, %v154
    %v165 = vpack.c.b16 %v157, %v156
    %174 = vmatpush.bf16.msra.mxu0 %v165
    %175 = vmatpush.bf16.msra.mxu0 %v164
    %176 = vmatpush.bf16.msra.mxu0 %v163
    %177 = vmatpush.bf16.msra.mxu0 %v162
    %178 = vmatpush.bf16.msra.mxu0 %v161
    %179 = vmatpush.bf16.msra.mxu0 %v160
    %180 = vmatpush.bf16.msra.mxu0 %v159
    %181 = vmatpush.bf16.msra.mxu0 %v158
    %182 = vmatmul.bf16.gmra.mxu0 %v101
    %v183 = vpop.f32.mrf.mxu0
    %v184 = vadd.f32 %v120, %v183
    %v185 = vpop.f32.mrf.mxu0
    %v186 = vadd.f32 %v121, %v185
    %187 = vdwg.mxu0
    %v188 = vmul.f32 %v184, %v124
    %v189 = vmul.f32 %v186, %v125
    %v190 = vld [vmem:[%s4] sm:$0x1]
    %v192 = vperm.slane %v190, 0
    %v194 = vadd.f32 %v188, %v192
    %v195 = vadd.f32 %v189, %v192
    %vm196 = vcmask 130048
    %197 = vst.msk [vmem:[#allocation2] sm:$0xff] %vm196, %v194
    %198 = vst.msk [vmem:[#allocation2 + $0x8] sm:$0xff] %vm196, %v195
    // Predicated region
    $region30: #{tpu_custom_call.1} parent=1 // pred_check
      _
    $region31: #{tpu_custom_call.1} parent=1 // pred_check_branch
      %200 = sbr.rel (0) target = $region33
    $region32: #{tpu_custom_call.1} parent=1 // pred_region
      %202 = vsyncadd [#allocation3], 0
      %s203 = sshll.u32 [#allocation2], 4
      %s204 = int_to_ptr.vmem [resolvable:$true] %s203
      %s205 = sshll.u32 %s7, 4
      %s206 = int_to_ptr.hbm [resolvable:$true] %s205
      %211 = dma.vmem_to_hbm [thread:$0]  %s204, 256, %s206, [#allocation3], 128, 128, 8
    $region33: #{tpu_custom_call.1} parent=1 // pred_fallthru
      _
    // Predicated region
    $region34: #{tpu_custom_call.1} parent=1 // pred_check
      _
    $region35: #{tpu_custom_call.1} parent=1 // pred_check_branch
      %213 = sbr.rel (0) target = $region37
    $region36: #{tpu_custom_call.1} parent=1 // pred_region
      %215 = dma.done [#allocation3], 256
    $region37: #{tpu_custom_call.1} parent=1 // pred_fallthru
      _
    %216 = vsyncpa [#allocation3], 1

</llo_original>
